<compile_context>
chip_gen: v7x
topology: tpu7x:2x2x1
jax: 0.10.0
libtpu: 0.0.40
codegen_flags: <defaults>
</compile_context>

<pallas_src>
import jax
import jax.numpy as jnp
from jax.experimental import pallas as pl
from jax.experimental.pallas import tpu as pltpu


def qnet_kernel(xT_ref, w1a_ref, w2p_ref, b2p_ref, oT_ref):
    # fc1 (+ folded bias via the ones row in xT / bias column in w1a),
    # f32 accumulation on the MXU.
    h = jnp.dot(w1a_ref[...], xT_ref[...],
                preferred_element_type=jnp.float32)          # (256, TB) f32
    # ReLU in f32 (v5e has no bf16 VALU), then pack to bf16 so the big
    # (256, TB) RHS of the second matmul uses the native bf16 MXU path and
    # half the vreg/VMEM footprint.
    p = jnp.maximum(h, 0.0).astype(jnp.bfloat16)             # (256, TB) bf16
    out = jnp.dot(w2p_ref[...], p,
                  preferred_element_type=jnp.float32)        # (8, TB) f32
    oT_ref[...] = out + b2p_ref[...]                         # (8, 1) broadcast


def _round_up(n, m):
    return (n + m - 1) // m * m


def _pick_tile(B, tile_b):
    # Lane-aligned (128); >=2 grid steps whenever the batch allows it (so the
    # "parallel" axis can split across v7x's 2 TensorCores); capped at 16384
    # so the resident hidden activations stay well inside VMEM on every gen.
    tb = min(tile_b, max(128, _round_up(pl.cdiv(B, 2), 128)))
    return min(tb, 16384)


def _vmem_limit_bytes(tb):
    # Per-step live set is dominated by the resident hidden activations:
    #   h  (f32, 256 x tb)              : 1024 * tb
    #   p  (bf16, 256 x tb)             :  512 * tb
    #   xT / oT tiles (double-buffered) :  ~96 * tb
    #   weights (bf16/f32, resident)    :  ~9 KiB
    need = tb * (1024 + 512 + 96) + (1 << 20)
    return max(32 << 20, int(need * 1.25))


def prepare_params(w1, b1, w2, b2):
    """One-time prep of PyTorch-layout params (w1 (256,4), b1 (256,),
    w2 (2,256), b2 (2,)) into the kernel's layout."""
    b1 = jnp.reshape(b1, (256, 1)).astype(jnp.float32)
    b2 = jnp.reshape(b2, (2, 1)).astype(jnp.float32)
    w1a = jnp.concatenate([w1, b1], axis=1).astype(jnp.bfloat16)   # (256, 5)
    w2p = jnp.pad(w2, ((0, 6), (0, 0))).astype(jnp.bfloat16)       # (8, 256)
    b2p = jnp.pad(b2, ((0, 6), (0, 0))).astype(jnp.float32)        # (8, 1)
    return w1a, w2p, b2p


def qnet_pallas_t(xT_aug, w1a, w2p, b2p, *, tile_b=8192):
    """Core call: xT_aug is (5, B) bf16 (4 features + a ones row), batch in
    lanes.  Returns (8, B) f32; rows 0..1 are the Q-values, rows 2..7 zero."""
    _, B = xT_aug.shape
    tb = _pick_tile(B, tile_b)
    grid = (pl.cdiv(B, tb),)            # no batch padding: boundary is masked
    return pl.pallas_call(
        qnet_kernel,
        out_shape=jax.ShapeDtypeStruct((8, B), jnp.float32),
        grid=grid,
        in_specs=[
            pl.BlockSpec((5, tb), lambda i: (0, i)),      # x tile, pipelined
            pl.BlockSpec((256, 5), lambda i: (0, 0)),     # W1|b1, VMEM-resident
            pl.BlockSpec((8, 256), lambda i: (0, 0)),     # W2 (rows padded to 8)
            pl.BlockSpec((8, 1), lambda i: (0, 0)),       # b2 (rows padded to 8)
        ],
        out_specs=pl.BlockSpec((8, tb), lambda i: (0, i)),  # lane-dense output
        compiler_params=pltpu.CompilerParams(
            dimension_semantics=("parallel",),
            vmem_limit_bytes=_vmem_limit_bytes(tb)),
    )(xT_aug, w1a, w2p, b2p)


def qnet_forward(x, params, *, tile_b=8192):
    """PyTorch-layout adapter: x (B, 4) f32 -> (B, 2) f32 Q-values.
    Single fused input-prep op (cast + append ones column + transpose); for
    deployment keep activations in (5, B) bf16 and call qnet_pallas_t."""
    w1a, w2p, b2p = params
    B = x.shape[0]
    ones = jnp.ones((B, 1), jnp.bfloat16)
    xT = jnp.concatenate([x.astype(jnp.bfloat16), ones], axis=1).T   # (5, B)
    oT = qnet_pallas_t(xT, w1a, w2p, b2p, tile_b=tile_b)             # (8, B)
    return oT[:2].T                                                  # (B, 2)


if __name__ == "__main__":
    key = jax.random.PRNGKey(0)
    kx, kp = jax.random.split(key)
    k1, k2, k3, k4 = jax.random.split(kp, 4)

    # nn.Linear default init: U(-1/sqrt(fan_in), +1/sqrt(fan_in)).
    bound1 = 1.0 / jnp.sqrt(4.0)
    bound2 = 1.0 / jnp.sqrt(256.0)
    w1 = jax.random.uniform(k1, (256, 4), jnp.float32, -bound1, bound1)
    b1 = jax.random.uniform(k2, (256,), jnp.float32, -bound1, bound1)
    w2 = jax.random.uniform(k3, (2, 256), jnp.float32, -bound2, bound2)
    b2 = jax.random.uniform(k4, (2,), jnp.float32, -bound2, bound2)
    params = prepare_params(w1, b1, w2, b2)

    def ref_forward(xx):  # exact f32 PyTorch semantics
        return jnp.maximum(xx @ w1.T + b1, 0.0) @ w2.T + b2

    # Small CartPole-style batch (single partial tile, masked boundary).
    B = 8
    x = jax.random.normal(kx, (B, 4), jnp.float32)
    out = jax.block_until_ready(qnet_forward(x, params))
    assert out.shape == (B, 2)
    # bf16 activations/weights => loosened tolerance vs the f32 reference.
    assert jnp.allclose(out, ref_forward(x), atol=5e-2, rtol=5e-2)

    # Non-multiple batch with a small tile: multi-step pipelined grid plus a
    # masked boundary block (no wrapper-side padding anywhere).
    B2 = 300
    x2 = jax.random.normal(kx, (B2, 4), jnp.float32)
    out2 = jax.block_until_ready(qnet_forward(x2, params, tile_b=256))
    assert out2.shape == (B2, 2)
    assert jnp.allclose(out2, ref_forward(x2), atol=5e-2, rtol=5e-2)

    print("KERNEL_OK")
</pallas_src>

<mosaic_0001>
module attributes {stable_mosaic.version = 11 : i64} {
  func.func @qnet_kernel(%arg0: i32, %arg1: memref<5x128xbf16, #tpu.memory_space<vmem>>, %arg2: memref<256x5xbf16, #tpu.memory_space<vmem>>, %arg3: memref<8x256xbf16, #tpu.memory_space<vmem>>, %arg4: memref<8x1xf32, #tpu.memory_space<vmem>>, %arg5: memref<8x128xf32, #tpu.memory_space<vmem>>) attributes {dimension_semantics = [#tpu.dimension_semantics<parallel>], iteration_bounds = array<i64: 1>, scalar_prefetch = 0 : i64, scratch_operands = 0 : i64, tpu.core_type = #tpu.core_type<tc>, window_params = [{transform_indices = @transform_0, window_bounds = array<i64: 5, 128>}, {pipeline_mode = #tpu.pipeline_mode<synchronous>, transform_indices = @transform_1, window_bounds = array<i64: 256, 5>}, {pipeline_mode = #tpu.pipeline_mode<synchronous>, transform_indices = @transform_2, window_bounds = array<i64: 8, 256>}, {pipeline_mode = #tpu.pipeline_mode<synchronous>, transform_indices = @transform_3, window_bounds = array<i64: 8, 1>}, {transform_indices = @transform_4, window_bounds = array<i64: 8, 128>}]} {
    %c0 = arith.constant 0 : index
    %c0_0 = arith.constant 0 : index
    %0 = vector.load %arg2[%c0, %c0_0] : memref<256x5xbf16, #tpu.memory_space<vmem>>, vector<256x5xbf16>
    %c0_1 = arith.constant 0 : index
    %c0_2 = arith.constant 0 : index
    %1 = vector.load %arg1[%c0_1, %c0_2] : memref<5x128xbf16, #tpu.memory_space<vmem>>, vector<5x128xbf16>
    %cst = arith.constant dense<0.000000e+00> : vector<256x128xf32>
    %2 = tpu.matmul %0, %1, %cst {dimension_numbers = #tpu.dot_dimension_numbers<[1], [0], [0], [1], [0, 0, 1, 1], [], []>} : vector<256x5xbf16>, vector<5x128xbf16>, vector<256x128xf32> -> vector<256x128xf32>
    %cst_3 = arith.constant 0.000000e+00 : f32
    %3 = vector.broadcast %cst_3 : f32 to vector<256x128xf32>
    %4 = arith.maximumf %2, %3 : vector<256x128xf32>
    %5 = arith.truncf %4 : vector<256x128xf32> to vector<256x128xbf16>
    %c0_4 = arith.constant 0 : index
    %c0_5 = arith.constant 0 : index
    %6 = vector.load %arg3[%c0_4, %c0_5] : memref<8x256xbf16, #tpu.memory_space<vmem>>, vector<8x256xbf16>
    %cst_6 = arith.constant dense<0.000000e+00> : vector<8x128xf32>
    %7 = tpu.matmul %6, %5, %cst_6 {dimension_numbers = #tpu.dot_dimension_numbers<[1], [0], [0], [1], [0, 0, 1, 1], [], []>} : vector<8x256xbf16>, vector<256x128xbf16>, vector<8x128xf32> -> vector<8x128xf32>
    %c0_7 = arith.constant 0 : index
    %c0_8 = arith.constant 0 : index
    %8 = vector.load %arg4[%c0_7, %c0_8] : memref<8x1xf32, #tpu.memory_space<vmem>>, vector<8x1xf32>
    %9 = vector.broadcast %8 : vector<8x1xf32> to vector<8x128xf32>
    %10 = arith.addf %7, %9 : vector<8x128xf32>
    %c0_9 = arith.constant 0 : index
    %c0_10 = arith.constant 0 : index
    %11 = vector.load %arg5[%c0_9, %c0_10] : memref<8x128xf32, #tpu.memory_space<vmem>>, vector<8x128xf32>
    tpu.vector_store %arg5[%c0_9, %c0_10], %10 {strides = array<i32>} : memref<8x128xf32, #tpu.memory_space<vmem>>, vector<8x128xf32>,
    return
  }
  func.func @transform_0(%arg0: i32) -> (i32, i32) {
    %c0_i32 = arith.constant 0 : i32
    %c0_i32_0 = arith.constant 0 : i32
    return %c0_i32, %arg0 : i32, i32
  }
  func.func @transform_1(%arg0: i32) -> (i32, i32) {
    %c0_i32 = arith.constant 0 : i32
    %c0_i32_0 = arith.constant 0 : i32
    %c0_i32_1 = arith.constant 0 : i32
    return %c0_i32, %c0_i32_0 : i32, i32
  }
  func.func @transform_2(%arg0: i32) -> (i32, i32) {
    %c0_i32 = arith.constant 0 : i32
    %c0_i32_0 = arith.constant 0 : i32
    %c0_i32_1 = arith.constant 0 : i32
    return %c0_i32, %c0_i32_0 : i32, i32
  }
  func.func @transform_3(%arg0: i32) -> (i32, i32) {
    %c0_i32 = arith.constant 0 : i32
    %c0_i32_0 = arith.constant 0 : i32
    %c0_i32_1 = arith.constant 0 : i32
    return %c0_i32, %c0_i32_0 : i32, i32
  }
  func.func @transform_4(%arg0: i32) -> (i32, i32) {
    %c0_i32 = arith.constant 0 : i32
    %c0_i32_0 = arith.constant 0 : i32
    return %c0_i32, %arg0 : i32, i32
  }
}

</mosaic_0001>

<llo_original>
// kernel: tpu_custom_call.1
$region0: #{tpu_custom_call.1}
  #allocation0 [shape = 'u32[]', space=smem, size = 0x4, offset = 0x4, fixed_abs, tag = 'smem constant byte address 0x4 - core index']
  #allocation1 [shape = 'u32[144,128]{1,0:T(1,128)}', space=vmem, size = 0x12000, scoped, tag = 'internal scratch']
  %s0 = inlined_call_operand.vmem [shape: bf16[5,8], index: 0, kind: input, shape index: {}]
  %s1 = inlined_call_operand.vmem [shape: bf16[256,5], index: 1, kind: input, shape index: {}]
  %s2 = inlined_call_operand.vmem [shape: bf16[8,256], index: 2, kind: input, shape index: {}]
  %s3 = inlined_call_operand.vmem [shape: f32[8,1], index: 3, kind: input, shape index: {}]
  %s4 = inlined_call_operand.hbm [shape: f32[8,8], index: 4, kind: output, shape index: {}]
  %s5 = sld [smem:[#allocation0]]
  $region26: #{tpu_custom_call.1} parent=0
    _
  %s7 = ssub.s32 1, %s5
  %s8 = scalar_select 0, %s7, %s5
  $region1: #{tpu_custom_call.1} parent=0
    #allocation2 [shape = 'u8[4096]{0}', space=vmem, size = 0x1000, scoped, tag = 'output window, operand 0, single buffered']
    #allocation3 [shape = 's32[1]{0}', space=sflag, size = 0x4, scoped, tag = 'scoped memory for tpu_custom_call.1']
    %9 = vsyncpa [#allocation3], 0
    // Predicated region
    $region2: #{tpu_custom_call.1} parent=1 // pred_check
      _
    $region3: #{tpu_custom_call.1} parent=1 // pred_check_branch
      %11 = sbr.rel (0) target = $region5
    $region4: #{tpu_custom_call.1} parent=1 // pred_region
      _
    $region5: #{tpu_custom_call.1} parent=1 // pred_fallthru
      _
    // Predicated region
    $region6: #{tpu_custom_call.1} parent=1 // pred_check
      _
    $region7: #{tpu_custom_call.1} parent=1 // pred_check_branch
      %13 = sbr.rel (0) target = $region9
    $region8: #{tpu_custom_call.1} parent=1 // pred_region
      _
    $region9: #{tpu_custom_call.1} parent=1 // pred_fallthru
      _
    // Predicated region
    $region10: #{tpu_custom_call.1} parent=1 // pred_check
      _
    $region11: #{tpu_custom_call.1} parent=1 // pred_check_branch
      %15 = sbr.rel (0) target = $region13
    $region12: #{tpu_custom_call.1} parent=1 // pred_region
      _
    $region13: #{tpu_custom_call.1} parent=1 // pred_fallthru
      _
    // Predicated region
    $region14: #{tpu_custom_call.1} parent=1 // pred_check
      _
    $region15: #{tpu_custom_call.1} parent=1 // pred_check_branch
      %17 = sbr.rel (0) target = $region17
    $region16: #{tpu_custom_call.1} parent=1 // pred_region
      _
    $region17: #{tpu_custom_call.1} parent=1 // pred_fallthru
      _
    %v19 = vld [vmem:[%s1] sm:$0xf]
    %v20 = vld [vmem:[%s1 + $0x4] sm:$0xf]
    %v21 = vld [vmem:[%s1 + $0x8] sm:$0xf]
    %v22 = vld [vmem:[%s1 + $0xc] sm:$0xf]
    %v23 = vld [vmem:[%s1 + $0x10] sm:$0xf]
    %v24 = vld [vmem:[%s1 + $0x14] sm:$0xf]
    %v25 = vld [vmem:[%s1 + $0x18] sm:$0xf]
    %v26 = vld [vmem:[%s1 + $0x1c] sm:$0xf]
    %v27 = vld [vmem:[%s1 + $0x20] sm:$0xf]
    %v28 = vld [vmem:[%s1 + $0x24] sm:$0xf]
    %v29 = vld [vmem:[%s1 + $0x28] sm:$0xf]
    %v30 = vld [vmem:[%s1 + $0x2c] sm:$0xf]
    %v31 = vld [vmem:[%s1 + $0x30] sm:$0xf]
    %v32 = vld [vmem:[%s1 + $0x34] sm:$0xf]
    %v33 = vld [vmem:[%s1 + $0x38] sm:$0xf]
    %v34 = vld [vmem:[%s1 + $0x3c] sm:$0xf]
    %v35 = vld [vmem:[%s1 + $0x40] sm:$0xf]
    %v36 = vld [vmem:[%s1 + $0x44] sm:$0xf]
    %v37 = vld [vmem:[%s1 + $0x48] sm:$0xf]
    %v38 = vld [vmem:[%s1 + $0x4c] sm:$0xf]
    %v39 = vld [vmem:[%s1 + $0x50] sm:$0xf]
    %v40 = vld [vmem:[%s1 + $0x54] sm:$0xf]
    %v41 = vld [vmem:[%s1 + $0x58] sm:$0xf]
    %v42 = vld [vmem:[%s1 + $0x5c] sm:$0xf]
    %v43 = vld [vmem:[%s1 + $0x60] sm:$0xf]
    %v44 = vld [vmem:[%s1 + $0x64] sm:$0xf]
    %v45 = vld [vmem:[%s1 + $0x68] sm:$0xf]
    %v46 = vld [vmem:[%s1 + $0x6c] sm:$0xf]
    %v47 = vld [vmem:[%s1 + $0x70] sm:$0xf]
    %v48 = vld [vmem:[%s1 + $0x74] sm:$0xf]
    %v49 = vld [vmem:[%s1 + $0x78] sm:$0xf]
    %v50 = vld [vmem:[%s1 + $0x7c] sm:$0xf]
    %v51 = vld [vmem:[%s0] sm:$0x7]
    %v84 = vunpack.c.l.b16 %v19
    %v85 = vunpack.c.l.b16 %v20
    %v86 = vunpack.c.l.b16 %v21
    %v87 = vunpack.c.l.b16 %v22
    %v88 = vunpack.c.l.b16 %v23
    %v89 = vunpack.c.l.b16 %v24
    %v90 = vunpack.c.l.b16 %v25
    %v91 = vunpack.c.l.b16 %v26
    %v92 = vunpack.c.l.b16 %v27
    %v93 = vunpack.c.l.b16 %v28
    %v94 = vunpack.c.l.b16 %v29
    %v95 = vunpack.c.l.b16 %v30
    %v96 = vunpack.c.l.b16 %v31
    %v97 = vunpack.c.l.b16 %v32
    %v98 = vunpack.c.l.b16 %v33
    %v99 = vunpack.c.l.b16 %v34
    %v100 = vunpack.c.l.b16 %v35
    %v101 = vunpack.c.l.b16 %v36
    %v102 = vunpack.c.l.b16 %v37
    %v103 = vunpack.c.l.b16 %v38
    %v104 = vunpack.c.l.b16 %v39
    %v105 = vunpack.c.l.b16 %v40
    %v106 = vunpack.c.l.b16 %v41
    %v107 = vunpack.c.l.b16 %v42
    %v108 = vunpack.c.l.b16 %v43
    %v109 = vunpack.c.l.b16 %v44
    %v110 = vunpack.c.l.b16 %v45
    %v111 = vunpack.c.l.b16 %v46
    %v112 = vunpack.c.l.b16 %v47
    %v113 = vunpack.c.l.b16 %v48
    %v114 = vunpack.c.l.b16 %v49
    %v115 = vunpack.c.l.b16 %v50
    %v116 = vpack.c.b16 %v85, %v84
    %v117 = vpack.c.b16 %v87, %v86
    %v118 = vpack.c.b16 %v89, %v88
    %v119 = vpack.c.b16 %v91, %v90
    %v120 = vpack.c.b16 %v93, %v92
    %v121 = vpack.c.b16 %v95, %v94
    %v122 = vpack.c.b16 %v97, %v96
    %v123 = vpack.c.b16 %v99, %v98
    %v124 = vpack.c.b16 %v101, %v100
    %v125 = vpack.c.b16 %v103, %v102
    %v126 = vpack.c.b16 %v105, %v104
    %v127 = vpack.c.b16 %v107, %v106
    %v128 = vpack.c.b16 %v109, %v108
    %v129 = vpack.c.b16 %v111, %v110
    %v130 = vpack.c.b16 %v113, %v112
    %v131 = vpack.c.b16 %v115, %v114
    %vm132 = vcmask 39936
    %v134 = vsel %vm132, %v116, 0
    %v137 = vsel %vm132, %v117, 0
    %v140 = vsel %vm132, %v118, 0
    %v143 = vsel %vm132, %v119, 0
    %v146 = vsel %vm132, %v120, 0
    %v149 = vsel %vm132, %v121, 0
    %v152 = vsel %vm132, %v122, 0
    %v155 = vsel %vm132, %v123, 0
    %v158 = vsel %vm132, %v124, 0
    %v161 = vsel %vm132, %v125, 0
    %v164 = vsel %vm132, %v126, 0
    %v167 = vsel %vm132, %v127, 0
    %v170 = vsel %vm132, %v128, 0
    %v173 = vsel %vm132, %v129, 0
    %v176 = vsel %vm132, %v130, 0
    %v179 = vsel %vm132, %v131, 0
    %vm181 = vcmask 1041408
    %vm182 = vcmask 1042432
    %v183 = vsel %vm181, 4294967295, 65535
    %v184 = vsel %vm182, %v183, 0
    %v186 = vand.u32 %v51, %v184
    %188 = vmatprep.subr.bf16.mxu0 0
    %189 = vmatpush1.bf16.msra.mxu0 %v186
    %190 = vmatprep.subr.bf16.mxu0 0
    %191 = vmatpush1.bf16.msra.mxu0 0
    %192 = vmatprep.subr.bf16.mxu0 0
    %193 = vmatpush1.bf16.msra.mxu0 0
    %194 = vmatprep.subr.bf16.mxu0 0
    %195 = vmatpush1.bf16.msra.mxu0 0
    %196 = vmatprep.subr.bf16.mxu0 0
    %197 = vmatpush1.bf16.msra.mxu0 0
    %198 = vmatprep.subr.bf16.mxu0 0
    %199 = vmatpush1.bf16.msra.mxu0 0
    %200 = vmatprep.subr.bf16.mxu0 0
    %201 = vmatpush1.bf16.msra.mxu0 0
    %202 = vmatprep.subr.bf16.mxu0 0
    %203 = vmatpush1.bf16.msra.mxu0 0
    %204 = vmatprep.subr.bf16.mxu0 0
    %205 = vmatpush1.bf16.msra.mxu0 0
    %206 = vmatprep.subr.bf16.mxu0 0
    %207 = vmatpush1.bf16.msra.mxu0 0
    %208 = vmatprep.subr.bf16.mxu0 0
    %209 = vmatpush1.bf16.msra.mxu0 0
    %210 = vmatprep.subr.bf16.mxu0 0
    %211 = vmatpush1.bf16.msra.mxu0 0
    %212 = vmatprep.subr.bf16.mxu0 0
    %213 = vmatpush1.bf16.msra.mxu0 0
    %214 = vmatprep.subr.bf16.mxu0 0
    %215 = vmatpush1.bf16.msra.mxu0 0
    %216 = vmatprep.subr.bf16.mxu0 0
    %217 = vmatpush1.bf16.msra.mxu0 0
    %218 = vmatprep.subr.bf16.mxu0 0
    %219 = vmatpush1.bf16.msra.mxu0 0
    %220 = vmatprep.mubr.bf16.mxu0 0
    %221 = vmatmul.mubr.bf16.gmra.mrb[0].mxu0 %v134
    %v222 = vpop.f32.mrb[0].mxu0
    %v223 = vadd.f32 0.0, %v222
    %v224 = vpop.f32.mrb[0].mxu0
    %v225 = vpop.f32.mrb[0].mxu0
    %v226 = vadd.f32 0.0, %v225
    %v227 = vpop.f32.mrb[0].mxu0
    %228 = vmatprep.mubr.bf16.mxu0 0
    %229 = vmatmul.mubr.bf16.gmra.mrb[0].mxu0 %v137
    %v230 = vpop.f32.mrb[0].mxu0
    %v231 = vadd.f32 0.0, %v230
    %v232 = vpop.f32.mrb[0].mxu0
    %v233 = vpop.f32.mrb[0].mxu0
    %v234 = vadd.f32 0.0, %v233
    %v235 = vpop.f32.mrb[0].mxu0
    %236 = vmatprep.mubr.bf16.mxu0 0
    %237 = vmatmul.mubr.bf16.gmra.mrb[0].mxu0 %v140
    %v238 = vpop.f32.mrb[0].mxu0
    %v239 = vadd.f32 0.0, %v238
    %v240 = vpop.f32.mrb[0].mxu0
    %v241 = vpop.f32.mrb[0].mxu0
    %v242 = vadd.f32 0.0, %v241
    %v243 = vpop.f32.mrb[0].mxu0
    %244 = vmatprep.mubr.bf16.mxu0 0
    %245 = vmatmul.mubr.bf16.gmra.mrb[0].mxu0 %v143
    %v246 = vpop.f32.mrb[0].mxu0
    %v247 = vadd.f32 0.0, %v246
    %v248 = vpop.f32.mrb[0].mxu0
    %v249 = vpop.f32.mrb[0].mxu0
    %v250 = vadd.f32 0.0, %v249
    %v251 = vpop.f32.mrb[0].mxu0
    %252 = vmatprep.mubr.bf16.mxu0 0
    %253 = vmatmul.mubr.bf16.gmra.mrb[0].mxu0 %v146
    %v254 = vpop.f32.mrb[0].mxu0
    %v255 = vadd.f32 0.0, %v254
    %v256 = vpop.f32.mrb[0].mxu0
    %v257 = vpop.f32.mrb[0].mxu0
    %v258 = vadd.f32 0.0, %v257
    %v259 = vpop.f32.mrb[0].mxu0
    %260 = vmatprep.mubr.bf16.mxu0 0
    %261 = vmatmul.mubr.bf16.gmra.mrb[0].mxu0 %v149
    %v262 = vpop.f32.mrb[0].mxu0
    %v263 = vadd.f32 0.0, %v262
    %v264 = vpop.f32.mrb[0].mxu0
    %v265 = vpop.f32.mrb[0].mxu0
    %v266 = vadd.f32 0.0, %v265
    %v267 = vpop.f32.mrb[0].mxu0
    %268 = vmatprep.mubr.bf16.mxu0 0
    %269 = vmatmul.mubr.bf16.gmra.mrb[0].mxu0 %v152
    %v270 = vpop.f32.mrb[0].mxu0
    %v271 = vadd.f32 0.0, %v270
    %v272 = vpop.f32.mrb[0].mxu0
    %v273 = vpop.f32.mrb[0].mxu0
    %v274 = vadd.f32 0.0, %v273
    %v275 = vpop.f32.mrb[0].mxu0
    %276 = vmatprep.mubr.bf16.mxu0 0
    %277 = vmatmul.mubr.bf16.gmra.mrb[0].mxu0 %v155
    %v278 = vpop.f32.mrb[0].mxu0
    %v279 = vadd.f32 0.0, %v278
    %v280 = vpop.f32.mrb[0].mxu0
    %v281 = vpop.f32.mrb[0].mxu0
    %v282 = vadd.f32 0.0, %v281
    %v283 = vpop.f32.mrb[0].mxu0
    %284 = vmatprep.mubr.bf16.mxu0 0
    %285 = vmatmul.mubr.bf16.gmra.mrb[0].mxu0 %v158
    %v286 = vpop.f32.mrb[0].mxu0
    %v287 = vadd.f32 0.0, %v286
    %v288 = vpop.f32.mrb[0].mxu0
    %v289 = vpop.f32.mrb[0].mxu0
    %v290 = vadd.f32 0.0, %v289
    %v291 = vpop.f32.mrb[0].mxu0
    %292 = vmatprep.mubr.bf16.mxu0 0
    %293 = vmatmul.mubr.bf16.gmra.mrb[0].mxu0 %v161
    %v294 = vpop.f32.mrb[0].mxu0
    %v295 = vadd.f32 0.0, %v294
    %v296 = vpop.f32.mrb[0].mxu0
    %v297 = vpop.f32.mrb[0].mxu0
    %v298 = vadd.f32 0.0, %v297
    %v299 = vpop.f32.mrb[0].mxu0
    %300 = vmatprep.mubr.bf16.mxu0 0
    %301 = vmatmul.mubr.bf16.gmra.mrb[0].mxu0 %v164
    %v302 = vpop.f32.mrb[0].mxu0
    %v303 = vadd.f32 0.0, %v302
    %v304 = vpop.f32.mrb[0].mxu0
    %v305 = vpop.f32.mrb[0].mxu0
    %v306 = vadd.f32 0.0, %v305
    %v307 = vpop.f32.mrb[0].mxu0
    %308 = vmatprep.mubr.bf16.mxu0 0
    %309 = vmatmul.mubr.bf16.gmra.mrb[0].mxu0 %v167
    %v310 = vpop.f32.mrb[0].mxu0
    %v311 = vadd.f32 0.0, %v310
    %v312 = vpop.f32.mrb[0].mxu0
    %v313 = vpop.f32.mrb[0].mxu0
    %v314 = vadd.f32 0.0, %v313
    %v315 = vpop.f32.mrb[0].mxu0
    %316 = vmatprep.mubr.bf16.mxu0 0
    %317 = vmatmul.mubr.bf16.gmra.mrb[0].mxu0 %v170
    %v318 = vpop.f32.mrb[0].mxu0
    %v319 = vadd.f32 0.0, %v318
    %v320 = vpop.f32.mrb[0].mxu0
    %v321 = vpop.f32.mrb[0].mxu0
    %v322 = vadd.f32 0.0, %v321
    %v323 = vpop.f32.mrb[0].mxu0
    %324 = vmatprep.mubr.bf16.mxu0 0
    %325 = vmatmul.mubr.bf16.gmra.mrb[0].mxu0 %v173
    %v326 = vpop.f32.mrb[0].mxu0
    %v327 = vadd.f32 0.0, %v326
    %v328 = vpop.f32.mrb[0].mxu0
    %v329 = vpop.f32.mrb[0].mxu0
    %v330 = vadd.f32 0.0, %v329
    %v331 = vpop.f32.mrb[0].mxu0
    %332 = vmatprep.mubr.bf16.mxu0 0
    %333 = vmatmul.mubr.bf16.gmra.mrb[0].mxu0 %v176
    %v334 = vpop.f32.mrb[0].mxu0
    %v335 = vadd.f32 0.0, %v334
    %v336 = vpop.f32.mrb[0].mxu0
    %v337 = vpop.f32.mrb[0].mxu0
    %v338 = vadd.f32 0.0, %v337
    %v339 = vpop.f32.mrb[0].mxu0
    %340 = vmatprep.mubr.bf16.mxu0 0
    %341 = vmatmul.mubr.bf16.gmra.mrb[0].mxu0 %v179
    %v342 = vpop.f32.mrb[0].mxu0
    %v343 = vadd.f32 0.0, %v342
    %v344 = vpop.f32.mrb[0].mxu0
    %v345 = vpop.f32.mrb[0].mxu0
    %v346 = vadd.f32 0.0, %v345
    %v347 = vpop.f32.mrb[0].mxu0
    %348 = vdwg.mxu0
    %v349 = vmax.f32 %v223, 0.0
    %v350 = vmax.f32 %v226, 0.0
    %v351 = vmax.f32 %v231, 0.0
    %v352 = vmax.f32 %v234, 0.0
    %v353 = vmax.f32 %v239, 0.0
    %v354 = vmax.f32 %v242, 0.0
    %v355 = vmax.f32 %v247, 0.0
    %v356 = vmax.f32 %v250, 0.0
    %v357 = vmax.f32 %v255, 0.0
    %v358 = vmax.f32 %v258, 0.0
    %v359 = vmax.f32 %v263, 0.0
    %v360 = vmax.f32 %v266, 0.0
    %v361 = vmax.f32 %v271, 0.0
    %v362 = vmax.f32 %v274, 0.0
    %v363 = vmax.f32 %v279, 0.0
    %v364 = vmax.f32 %v282, 0.0
    %v365 = vmax.f32 %v287, 0.0
    %v366 = vmax.f32 %v290, 0.0
    %v367 = vmax.f32 %v295, 0.0
    %v368 = vmax.f32 %v298, 0.0
    %v369 = vmax.f32 %v303, 0.0
    %v370 = vmax.f32 %v306, 0.0
    %v371 = vmax.f32 %v311, 0.0
    %v372 = vmax.f32 %v314, 0.0
    %v373 = vmax.f32 %v319, 0.0
    %v374 = vmax.f32 %v322, 0.0
    %v375 = vmax.f32 %v327, 0.0
    %v376 = vmax.f32 %v330, 0.0
    %v377 = vmax.f32 %v335, 0.0
    %v378 = vmax.f32 %v338, 0.0
    %v379 = vmax.f32 %v343, 0.0
    %v380 = vmax.f32 %v346, 0.0
    %v381 = vpack.c.bf16 %v350, %v349
    %v382 = vpack.c.bf16 %v352, %v351
    %v383 = vpack.c.bf16 %v354, %v353
    %v384 = vpack.c.bf16 %v356, %v355
    %v385 = vpack.c.bf16 %v358, %v357
    %v386 = vpack.c.bf16 %v360, %v359
    %v387 = vpack.c.bf16 %v362, %v361
    %v388 = vpack.c.bf16 %v364, %v363
    %v389 = vpack.c.bf16 %v366, %v365
    %v390 = vpack.c.bf16 %v368, %v367
    %v391 = vpack.c.bf16 %v370, %v369
    %v392 = vpack.c.bf16 %v372, %v371
    %v393 = vpack.c.bf16 %v374, %v373
    %v394 = vpack.c.bf16 %v376, %v375
    %v395 = vpack.c.bf16 %v378, %v377
    %v396 = vpack.c.bf16 %v380, %v379
    %v397 = vld [vmem:[%s2] sm:$0xff]
    %v398 = vld [vmem:[%s3] sm:$0xff]
    %400 = vset.pattern.permute.xlu0 0
    %401 = vperm.xlu0 %400, %v398
    %v402 = vpop.permute.xlu0 %401
    %v405 = vunpack.c.l.b16 %v397
    %v406 = vunpack.c.h.b16 %v397
    %v407 = vpack.c.b16 %v405, %v405
    %v408 = vpack.c.b16 %v406, %v406
    %411 = vmatprep.subr.bf16.mxu0 0
    %412 = vmatpush1.bf16.msra.mxu0 %v381
    %413 = vmatprep.subr.bf16.mxu0 0
    %414 = vmatpush1.bf16.msra.mxu0 %v382
    %415 = vmatprep.subr.bf16.mxu0 0
    %416 = vmatpush1.bf16.msra.mxu0 %v383
    %417 = vmatprep.subr.bf16.mxu0 0
    %418 = vmatpush1.bf16.msra.mxu0 %v384
    %419 = vmatprep.subr.bf16.mxu0 0
    %420 = vmatpush1.bf16.msra.mxu0 %v385
    %421 = vmatprep.subr.bf16.mxu0 0
    %422 = vmatpush1.bf16.msra.mxu0 %v386
    %423 = vmatprep.subr.bf16.mxu0 0
    %424 = vmatpush1.bf16.msra.mxu0 %v387
    %425 = vmatprep.subr.bf16.mxu0 0
    %426 = vmatpush1.bf16.msra.mxu0 %v388
    %427 = vmatprep.subr.bf16.mxu0 0
    %428 = vmatpush1.bf16.msra.mxu0 %v389
    %429 = vmatprep.subr.bf16.mxu0 0
    %430 = vmatpush1.bf16.msra.mxu0 %v390
    %431 = vmatprep.subr.bf16.mxu0 0
    %432 = vmatpush1.bf16.msra.mxu0 %v391
    %433 = vmatprep.subr.bf16.mxu0 0
    %434 = vmatpush1.bf16.msra.mxu0 %v392
    %435 = vmatprep.subr.bf16.mxu0 0
    %436 = vmatpush1.bf16.msra.mxu0 %v393
    %437 = vmatprep.subr.bf16.mxu0 0
    %438 = vmatpush1.bf16.msra.mxu0 %v394
    %439 = vmatprep.subr.bf16.mxu0 0
    %440 = vmatpush1.bf16.msra.mxu0 %v395
    %441 = vmatprep.subr.bf16.mxu0 0
    %442 = vmatpush1.bf16.msra.mxu0 %v396
    %443 = vmatprep.mubr.bf16.mxu0 %v408
    %444 = vmatmul.mubr.bf16.gmra.mrb[0].mxu0 %v407
    %v445 = vpop.f32.mrb[0].mxu0
    %v446 = vadd.f32 %v402, %v445
    %v447 = vpop.f32.mrb[0].mxu0
    %v448 = vpop.f32.mrb[0].mxu0
    %v449 = vpop.f32.mrb[0].mxu0
    %450 = vdwg.mxu0
    %451 = vst [vmem:[#allocation2] sm:$0xff] %v446
    // Predicated region
    $region18: #{tpu_custom_call.1} parent=1 // pred_check
      _
    $region19: #{tpu_custom_call.1} parent=1 // pred_check_branch
      %453 = sbr.rel (0) target = $region21
    $region20: #{tpu_custom_call.1} parent=1 // pred_region
      %s455 = ssub.s32 128, 128
      %456 = vsyncadd [#allocation3], %s455
      %s458 = sshll.u32 [#allocation2], 4
      %s459 = int_to_ptr.vmem [resolvable:$true] %s458
      %461 = dma.vmem_to_hbm [thread:$0]  %s459, 128, %s4, [#allocation3]
    $region21: #{tpu_custom_call.1} parent=1 // pred_fallthru
      _
    // Predicated region
    $region22: #{tpu_custom_call.1} parent=1 // pred_check
      _
    $region23: #{tpu_custom_call.1} parent=1 // pred_check_branch
      %463 = sbr.rel (0) target = $region25
    $region24: #{tpu_custom_call.1} parent=1 // pred_region
      %464 = dma.done [#allocation3], 128
    $region25: #{tpu_custom_call.1} parent=1 // pred_fallthru
      _
    %465 = vsyncpa [#allocation3], 1

</llo_original>
